<compile_context>
chip_gen: v6e
topology: v6e:2x2x1
jax: 0.10.0
libtpu: 0.0.40
codegen_flags: <defaults>
</compile_context>

<pallas_src>
import functools

import jax
import jax.numpy as jnp
from jax.experimental import pallas as pl
from jax.experimental.pallas import tpu as pltpu

H1 = 512
H2 = 256


def _round_up(x, m):
    return ((x + m - 1) // m) * m


def _cdiv(a, b):
    return (a + b - 1) // b


def mlp_kernel(x_ref, w1_ref, b1_ref, w2_ref, b2_ref, w3_ref, b3_ref, o_ref,
               h1_ref, h2_ref):
    # fcn1 + ReLU: x streamed as f32, cast to bf16 at the MXU input,
    # f32 accumulate, f32 bias/ReLU epilogue, bf16 store to scratch.
    x = x_ref[...].astype(jnp.bfloat16)
    h1 = jnp.dot(x, w1_ref[...], preferred_element_type=jnp.float32)
    h1_ref[...] = jnp.maximum(h1 + b1_ref[...], 0.0).astype(jnp.bfloat16)

    # fcn2 + ReLU (scratch already bf16 -> feeds the MXU directly)
    h2 = jnp.dot(h1_ref[...], w2_ref[...], preferred_element_type=jnp.float32)
    h2_ref[...] = jnp.maximum(h2 + b2_ref[...], 0.0).astype(jnp.bfloat16)

    # fcn3 + Sigmoid (stable tanh form; tanh runs on the EUP slot)
    z = jnp.dot(h2_ref[...], w3_ref[...], preferred_element_type=jnp.float32)
    z = z + b3_ref[...]
    o_ref[...] = (0.5 * (jnp.tanh(0.5 * z) + 1.0)).astype(o_ref.dtype)


@functools.partial(jax.jit, static_argnames=("block_b",))
def mlp_forward(x, params, *, block_b=1024):
    w1, b1, w2, b2, w3, b3 = params
    B, in_dim = x.shape
    out_dim = w3.shape[1]

    bf16 = jnp.bfloat16
    # No-ops under jit when params were prepared via prepare_params().
    w1 = w1.astype(bf16)
    w2 = w2.astype(bf16)
    w3 = w3.astype(bf16)
    b1 = b1.astype(jnp.float32)
    b2 = b2.astype(jnp.float32)
    b3 = b3.astype(jnp.float32)

    # Balanced batch tiles; at least two tiles (when B permits) so v7x's two
    # TensorCores both receive grid steps under dimension_semantics=parallel.
    n_tiles = max(_cdiv(B, block_b), 1)
    if B >= 32:
        n_tiles = max(n_tiles, 2)
    TB = _round_up(_cdiv(B, n_tiles), 16)
    B_pad = _round_up(B, TB)

    x_p = jnp.pad(x, ((0, B_pad - B), (0, 0))) if B_pad != B else x

    grid = (B_pad // TB,)

    # x / out stream per batch tile; weights & biases stay resident (constant
    # index_map). Resident operands total < 1 MiB so extra pipeline buffers
    # are irrelevant for VMEM headroom; pl.Buffered(1) intentionally omitted.
    in_specs = [
        pl.BlockSpec((TB, in_dim), lambda i: (i, 0)),    # x
        pl.BlockSpec((in_dim, H1), lambda i: (0, 0)),    # w1
        pl.BlockSpec((1, H1), lambda i: (0, 0)),         # b1
        pl.BlockSpec((H1, H2), lambda i: (0, 0)),        # w2
        pl.BlockSpec((1, H2), lambda i: (0, 0)),         # b2
        pl.BlockSpec((H2, out_dim), lambda i: (0, 0)),   # w3
        pl.BlockSpec((1, out_dim), lambda i: (0, 0)),    # b3
    ]
    out_specs = pl.BlockSpec((TB, out_dim), lambda i: (i, 0))

    flops = 2 * B_pad * (in_dim * H1 + H1 * H2 + H2 * out_dim)
    bytes_accessed = (
        x_p.size * 4
        + (w1.size + w2.size + w3.size) * 2
        + (b1.size + b2.size + b3.size) * 4
        + B_pad * out_dim * 4
    )
    cost = pl.CostEstimate(flops=flops,
                           transcendentals=B_pad * out_dim,
                           bytes_accessed=bytes_accessed)

    out_p = pl.pallas_call(
        mlp_kernel,
        out_shape=jax.ShapeDtypeStruct((B_pad, out_dim), jnp.float32),
        grid=grid,
        in_specs=in_specs,
        out_specs=out_specs,
        scratch_shapes=[
            pltpu.VMEM((TB, H1), jnp.bfloat16),   # h1
            pltpu.VMEM((TB, H2), jnp.bfloat16),   # h2
        ],
        compiler_params=pltpu.CompilerParams(
            dimension_semantics=("parallel",),
            vmem_limit_bytes=32 * 1024 * 1024,
        ),
        cost_estimate=cost,
    )(x_p, w1, b1, w2, b2, w3, b3)

    return out_p[:B] if B_pad != B else out_p


def prepare_params(params):
    """One-time cast: weights -> bf16 (MXU input dtype), biases -> f32."""
    w1, b1, w2, b2, w3, b3 = params
    return (w1.astype(jnp.bfloat16), b1.astype(jnp.float32),
            w2.astype(jnp.bfloat16), b2.astype(jnp.float32),
            w3.astype(jnp.bfloat16), b3.astype(jnp.float32))


def init_params(key, input_dim, output_dim):
    """Deterministic init mimicking nn.Linear's uniform(-1/sqrt(in), 1/sqrt(in))."""
    dims = [(input_dim, H1), (H1, H2), (H2, output_dim)]
    params = []
    for i, (d_in, d_out) in enumerate(dims):
        kw, kb = jax.random.split(jax.random.fold_in(key, i))
        bound = 1.0 / jnp.sqrt(d_in)
        w = jax.random.uniform(kw, (d_in, d_out), jnp.float32, -bound, bound)
        b = jax.random.uniform(kb, (1, d_out), jnp.float32, -bound, bound)
        params += [w, b]
    return params


def mlp_reference(x, params):
    """Pure-JAX reference with the same bf16-in / f32-accumulate matmuls."""
    w1, b1, w2, b2, w3, b3 = params
    bf16 = jnp.bfloat16
    h1 = jnp.maximum(
        jnp.dot(x.astype(bf16), w1.astype(bf16),
                preferred_element_type=jnp.float32) + b1, 0.0)
    h2 = jnp.maximum(
        jnp.dot(h1.astype(bf16), w2.astype(bf16),
                preferred_element_type=jnp.float32) + b2, 0.0)
    z = jnp.dot(h2.astype(bf16), w3.astype(bf16),
                preferred_element_type=jnp.float32) + b3
    return jax.nn.sigmoid(z)


if __name__ == "__main__":
    key = jax.random.PRNGKey(0)
    batch, input_dim, output_dim = 8, 64, 16

    kx, kp = jax.random.split(key)
    x = jax.random.normal(kx, (batch, input_dim), jnp.float32)
    params = init_params(kp, input_dim, output_dim)
    prepared = prepare_params(params)   # cast weights/biases once, not per call

    out = mlp_forward(x, prepared)
    jax.block_until_ready(out)

    ref = mlp_reference(x, params)
    assert out.shape == (batch, output_dim)
    assert jnp.allclose(out, ref, atol=2e-3, rtol=2e-3), (
        f"max abs diff {jnp.max(jnp.abs(out - ref))}")

    print("KERNEL_OK")
</pallas_src>

<mosaic_0001>
module attributes {stable_mosaic.version = 11 : i64} {
  func.func @mlp_kernel(%arg0: i32, %arg1: memref<16x64xf32, #tpu.memory_space<vmem>>, %arg2: memref<64x512xbf16, #tpu.memory_space<vmem>>, %arg3: memref<1x512xf32, #tpu.memory_space<vmem>>, %arg4: memref<512x256xbf16, #tpu.memory_space<vmem>>, %arg5: memref<1x256xf32, #tpu.memory_space<vmem>>, %arg6: memref<256x16xbf16, #tpu.memory_space<vmem>>, %arg7: memref<1x16xf32, #tpu.memory_space<vmem>>, %arg8: memref<16x16xf32, #tpu.memory_space<vmem>>, %arg9: memref<16x512xbf16, #tpu.memory_space<vmem>>, %arg10: memref<16x256xbf16, #tpu.memory_space<vmem>>) attributes {dimension_semantics = [#tpu.dimension_semantics<parallel>], iteration_bounds = array<i64: 1>, scalar_prefetch = 0 : i64, scratch_operands = 2 : i64, tpu.core_type = #tpu.core_type<tc>, window_params = [{transform_indices = @transform_0, window_bounds = array<i64: 16, 64>}, {pipeline_mode = #tpu.pipeline_mode<synchronous>, transform_indices = @transform_1, window_bounds = array<i64: 64, 512>}, {pipeline_mode = #tpu.pipeline_mode<synchronous>, transform_indices = @transform_2, window_bounds = array<i64: 1, 512>}, {pipeline_mode = #tpu.pipeline_mode<synchronous>, transform_indices = @transform_3, window_bounds = array<i64: 512, 256>}, {pipeline_mode = #tpu.pipeline_mode<synchronous>, transform_indices = @transform_4, window_bounds = array<i64: 1, 256>}, {pipeline_mode = #tpu.pipeline_mode<synchronous>, transform_indices = @transform_5, window_bounds = array<i64: 256, 16>}, {pipeline_mode = #tpu.pipeline_mode<synchronous>, transform_indices = @transform_6, window_bounds = array<i64: 1, 16>}, {transform_indices = @transform_7, window_bounds = array<i64: 16, 16>}]} {
    %c0 = arith.constant 0 : index
    %c0_0 = arith.constant 0 : index
    %0 = vector.load %arg1[%c0, %c0_0] : memref<16x64xf32, #tpu.memory_space<vmem>>, vector<16x64xf32>
    %1 = arith.truncf %0 : vector<16x64xf32> to vector<16x64xbf16>
    %c0_1 = arith.constant 0 : index
    %c0_2 = arith.constant 0 : index
    %2 = vector.load %arg2[%c0_1, %c0_2] : memref<64x512xbf16, #tpu.memory_space<vmem>>, vector<64x512xbf16>
    %cst = arith.constant dense<0.000000e+00> : vector<16x512xf32>
    %3 = tpu.matmul %1, %2, %cst {dimension_numbers = #tpu.dot_dimension_numbers<[1], [0], [0], [1], [0, 0, 1, 1], [], []>} : vector<16x64xbf16>, vector<64x512xbf16>, vector<16x512xf32> -> vector<16x512xf32>
    %c0_3 = arith.constant 0 : index
    %c0_4 = arith.constant 0 : index
    %4 = vector.load %arg3[%c0_3, %c0_4] : memref<1x512xf32, #tpu.memory_space<vmem>>, vector<1x512xf32>
    %5 = vector.broadcast %4 : vector<1x512xf32> to vector<16x512xf32>
    %6 = arith.addf %3, %5 : vector<16x512xf32>
    %cst_5 = arith.constant 0.000000e+00 : f32
    %7 = vector.broadcast %cst_5 : f32 to vector<16x512xf32>
    %8 = arith.maximumf %6, %7 : vector<16x512xf32>
    %9 = arith.truncf %8 : vector<16x512xf32> to vector<16x512xbf16>
    %c0_6 = arith.constant 0 : index
    %c0_7 = arith.constant 0 : index
    %10 = vector.load %arg9[%c0_6, %c0_7] : memref<16x512xbf16, #tpu.memory_space<vmem>>, vector<16x512xbf16>
    tpu.vector_store %arg9[%c0_6, %c0_7], %9 {strides = array<i32>} : memref<16x512xbf16, #tpu.memory_space<vmem>>, vector<16x512xbf16>,
    %c0_8 = arith.constant 0 : index
    %c0_9 = arith.constant 0 : index
    %11 = vector.load %arg9[%c0_8, %c0_9] : memref<16x512xbf16, #tpu.memory_space<vmem>>, vector<16x512xbf16>
    %c0_10 = arith.constant 0 : index
    %c0_11 = arith.constant 0 : index
    %12 = vector.load %arg4[%c0_10, %c0_11] : memref<512x256xbf16, #tpu.memory_space<vmem>>, vector<512x256xbf16>
    %cst_12 = arith.constant dense<0.000000e+00> : vector<16x256xf32>
    %13 = tpu.matmul %11, %12, %cst_12 {dimension_numbers = #tpu.dot_dimension_numbers<[1], [0], [0], [1], [0, 0, 1, 1], [], []>} : vector<16x512xbf16>, vector<512x256xbf16>, vector<16x256xf32> -> vector<16x256xf32>
    %c0_13 = arith.constant 0 : index
    %c0_14 = arith.constant 0 : index
    %14 = vector.load %arg5[%c0_13, %c0_14] : memref<1x256xf32, #tpu.memory_space<vmem>>, vector<1x256xf32>
    %15 = vector.broadcast %14 : vector<1x256xf32> to vector<16x256xf32>
    %16 = arith.addf %13, %15 : vector<16x256xf32>
    %cst_15 = arith.constant 0.000000e+00 : f32
    %17 = vector.broadcast %cst_15 : f32 to vector<16x256xf32>
    %18 = arith.maximumf %16, %17 : vector<16x256xf32>
    %19 = arith.truncf %18 : vector<16x256xf32> to vector<16x256xbf16>
    %c0_16 = arith.constant 0 : index
    %c0_17 = arith.constant 0 : index
    %20 = vector.load %arg10[%c0_16, %c0_17] : memref<16x256xbf16, #tpu.memory_space<vmem>>, vector<16x256xbf16>
    tpu.vector_store %arg10[%c0_16, %c0_17], %19 {strides = array<i32>} : memref<16x256xbf16, #tpu.memory_space<vmem>>, vector<16x256xbf16>,
    %c0_18 = arith.constant 0 : index
    %c0_19 = arith.constant 0 : index
    %21 = vector.load %arg10[%c0_18, %c0_19] : memref<16x256xbf16, #tpu.memory_space<vmem>>, vector<16x256xbf16>
    %c0_20 = arith.constant 0 : index
    %c0_21 = arith.constant 0 : index
    %22 = vector.load %arg6[%c0_20, %c0_21] : memref<256x16xbf16, #tpu.memory_space<vmem>>, vector<256x16xbf16>
    %cst_22 = arith.constant dense<0.000000e+00> : vector<16x16xf32>
    %23 = tpu.matmul %21, %22, %cst_22 {dimension_numbers = #tpu.dot_dimension_numbers<[1], [0], [0], [1], [0, 0, 1, 1], [], []>} : vector<16x256xbf16>, vector<256x16xbf16>, vector<16x16xf32> -> vector<16x16xf32>
    %c0_23 = arith.constant 0 : index
    %c0_24 = arith.constant 0 : index
    %24 = vector.load %arg7[%c0_23, %c0_24] : memref<1x16xf32, #tpu.memory_space<vmem>>, vector<1x16xf32>
    %25 = vector.broadcast %24 : vector<1x16xf32> to vector<16x16xf32>
    %26 = arith.addf %23, %25 : vector<16x16xf32>
    %cst_25 = arith.constant 5.000000e-01 : f32
    %27 = vector.broadcast %cst_25 : f32 to vector<16x16xf32>
    %28 = arith.mulf %27, %26 : vector<16x16xf32>
    %29 = math.tanh %28 : vector<16x16xf32>
    %cst_26 = arith.constant 1.000000e+00 : f32
    %30 = vector.broadcast %cst_26 : f32 to vector<16x16xf32>
    %31 = arith.addf %29, %30 : vector<16x16xf32>
    %cst_27 = arith.constant 5.000000e-01 : f32
    %32 = vector.broadcast %cst_27 : f32 to vector<16x16xf32>
    %33 = arith.mulf %32, %31 : vector<16x16xf32>
    %c0_28 = arith.constant 0 : index
    %c0_29 = arith.constant 0 : index
    %34 = vector.load %arg8[%c0_28, %c0_29] : memref<16x16xf32, #tpu.memory_space<vmem>>, vector<16x16xf32>
    tpu.vector_store %arg8[%c0_28, %c0_29], %33 {strides = array<i32>} : memref<16x16xf32, #tpu.memory_space<vmem>>, vector<16x16xf32>,
    return
  }
  func.func @transform_0(%arg0: i32) -> (i32, i32) {
    %c0_i32 = arith.constant 0 : i32
    %c0_i32_0 = arith.constant 0 : i32
    return %arg0, %c0_i32 : i32, i32
  }
  func.func @transform_1(%arg0: i32) -> (i32, i32) {
    %c0_i32 = arith.constant 0 : i32
    %c0_i32_0 = arith.constant 0 : i32
    %c0_i32_1 = arith.constant 0 : i32
    return %c0_i32, %c0_i32_0 : i32, i32
  }
  func.func @transform_2(%arg0: i32) -> (i32, i32) {
    %c0_i32 = arith.constant 0 : i32
    %c0_i32_0 = arith.constant 0 : i32
    %c0_i32_1 = arith.constant 0 : i32
    return %c0_i32, %c0_i32_0 : i32, i32
  }
  func.func @transform_3(%arg0: i32) -> (i32, i32) {
    %c0_i32 = arith.constant 0 : i32
    %c0_i32_0 = arith.constant 0 : i32
    %c0_i32_1 = arith.constant 0 : i32
    return %c0_i32, %c0_i32_0 : i32, i32
  }
  func.func @transform_4(%arg0: i32) -> (i32, i32) {
    %c0_i32 = arith.constant 0 : i32
    %c0_i32_0 = arith.constant 0 : i32
    %c0_i32_1 = arith.constant 0 : i32
    return %c0_i32, %c0_i32_0 : i32, i32
  }
  func.func @transform_5(%arg0: i32) -> (i32, i32) {
    %c0_i32 = arith.constant 0 : i32
    %c0_i32_0 = arith.constant 0 : i32
    %c0_i32_1 = arith.constant 0 : i32
    return %c0_i32, %c0_i32_0 : i32, i32
  }
  func.func @transform_6(%arg0: i32) -> (i32, i32) {
    %c0_i32 = arith.constant 0 : i32
    %c0_i32_0 = arith.constant 0 : i32
    %c0_i32_1 = arith.constant 0 : i32
    return %c0_i32, %c0_i32_0 : i32, i32
  }
  func.func @transform_7(%arg0: i32) -> (i32, i32) {
    %c0_i32 = arith.constant 0 : i32
    %c0_i32_0 = arith.constant 0 : i32
    return %arg0, %c0_i32 : i32, i32
  }
}

</mosaic_0001>

<llo_original>
// kernel: mlp_forward.1
$region0: #{mlp_forward.1}
  #allocation0 [shape = 'u32[]', space=smem, size = 0x4, offset = 0x4, fixed_abs, tag = 'smem constant byte address 0x4 - core index']
  #allocation1 [shape = 'u32[144,128]{1,0:T(1,128)}', space=vmem, size = 0x12000, scoped, tag = 'internal scratch']
  #allocation2 [shape = 'bf16[16,512]{1,0:T(8,128)(2,1)}', space=vmem, size = 0x4000, scoped, tag = 'scratch operand']
  #allocation3 [shape = 'bf16[16,256]{1,0:T(8,128)(2,1)}', space=vmem, size = 0x2000, scoped, tag = 'scratch operand']
  %s0 = inlined_call_operand.vmem [shape: f32[16,64], index: 0, kind: input, shape index: {}]
  %s1 = inlined_call_operand.vmem [shape: bf16[64,512], index: 1, kind: input, shape index: {}]
  %s2 = inlined_call_operand.vmem [shape: f32[1,512], index: 2, kind: input, shape index: {}]
  %s3 = inlined_call_operand.hbm [shape: bf16[512,256], index: 3, kind: input, shape index: {}]
  %s4 = inlined_call_operand.vmem [shape: f32[1,256], index: 4, kind: input, shape index: {}]
  %s5 = inlined_call_operand.vmem [shape: bf16[256,16], index: 5, kind: input, shape index: {}]
  %s6 = inlined_call_operand.vmem [shape: f32[1,16], index: 6, kind: input, shape index: {}]
  %s7 = inlined_call_operand.vmem [shape: f32[16,16], index: 7, kind: output, shape index: {}]
  %s8 = sld [smem:[#allocation0]]
  $region42: #{mlp_forward.1} parent=0
    _
  %s10 = ssub.s32 1, %s8
  %s11 = scalar_select 0, %s10, %s8
  $region1: #{mlp_forward.1} parent=0
    #allocation4 [shape = 'u8[262144]{0}', space=vmem, size = 0x40000, scoped, tag = 'input window, operand 3, single buffered']
    #allocation5 [shape = 's32[1]{0}', space=sflag, size = 0x4, scoped, tag = 'scoped memory for mlp_forward.1']
    %12 = vsyncpa [#allocation5], 0
    // Predicated region
    $region2: #{mlp_forward.1} parent=1 // pred_check
      _
    $region3: #{mlp_forward.1} parent=1 // pred_check_branch
      %14 = sbr.rel (0) target = $region5
    $region4: #{mlp_forward.1} parent=1 // pred_region
      _
    $region5: #{mlp_forward.1} parent=1 // pred_fallthru
      _
    // Predicated region
    $region6: #{mlp_forward.1} parent=1 // pred_check
      _
    $region7: #{mlp_forward.1} parent=1 // pred_check_branch
      %16 = sbr.rel (0) target = $region9
    $region8: #{mlp_forward.1} parent=1 // pred_region
      _
    $region9: #{mlp_forward.1} parent=1 // pred_fallthru
      _
    // Predicated region
    $region10: #{mlp_forward.1} parent=1 // pred_check
      _
    $region11: #{mlp_forward.1} parent=1 // pred_check_branch
      %18 = sbr.rel (0) target = $region13
    $region12: #{mlp_forward.1} parent=1 // pred_region
      _
    $region13: #{mlp_forward.1} parent=1 // pred_fallthru
      _
    // Predicated region
    $region14: #{mlp_forward.1} parent=1 // pred_check
      _
    $region15: #{mlp_forward.1} parent=1 // pred_check_branch
      %20 = sbr.rel (0) target = $region17
    $region16: #{mlp_forward.1} parent=1 // pred_region
      %s22 = ssub.s32 8192, 8192
      %23 = vsyncadd [#allocation5], %s22
      %s24 = sshll.u32 [#allocation4], 4
      %s25 = int_to_ptr.vmem [resolvable:$true] %s24
      %30 = dma.hbm_to_vmem [thread:$0]  %s3, 8192, %s25, [#allocation5], 128, 128, 8
    $region17: #{mlp_forward.1} parent=1 // pred_fallthru
      _
    // Predicated region
    $region18: #{mlp_forward.1} parent=1 // pred_check
      _
    $region19: #{mlp_forward.1} parent=1 // pred_check_branch
      %32 = sbr.rel (0) target = $region21
    $region20: #{mlp_forward.1} parent=1 // pred_region
      _
    $region21: #{mlp_forward.1} parent=1 // pred_fallthru
      _
    // Predicated region
    $region22: #{mlp_forward.1} parent=1 // pred_check
      _
    $region23: #{mlp_forward.1} parent=1 // pred_check_branch
      %34 = sbr.rel (0) target = $region25
    $region24: #{mlp_forward.1} parent=1 // pred_region
      _
    $region25: #{mlp_forward.1} parent=1 // pred_fallthru
      _
    // Predicated region
    $region26: #{mlp_forward.1} parent=1 // pred_check
      _
    $region27: #{mlp_forward.1} parent=1 // pred_check_branch
      %36 = sbr.rel (0) target = $region29
    $region28: #{mlp_forward.1} parent=1 // pred_region
      _
    $region29: #{mlp_forward.1} parent=1 // pred_fallthru
      _
    // Predicated region
    $region30: #{mlp_forward.1} parent=1 // pred_check
      _
    $region31: #{mlp_forward.1} parent=1 // pred_check_branch
      %38 = sbr.rel (0) target = $region33
    $region32: #{mlp_forward.1} parent=1 // pred_region
      %39 = dma.done [#allocation5], 8192
    $region33: #{mlp_forward.1} parent=1 // pred_fallthru
      _
    %v41 = vld [vmem:[%s0] sm:$0xff]
    %v42 = vld [vmem:[%s0 + $0x8] sm:$0xff]
    %v43 = vpack.c.bf16 %v42, %v41
    %v44 = vld [vmem:[%s1] sm:$0xff]
    %v45 = vld [vmem:[%s1 + $0x8] sm:$0xff]
    %v46 = vld [vmem:[%s1 + $0x10] sm:$0xff]
    %v47 = vld [vmem:[%s1 + $0x18] sm:$0xff]
    %v48 = vld [vmem:[%s1 + $0x20] sm:$0xff]
    %v49 = vld [vmem:[%s1 + $0x28] sm:$0xff]
    %v50 = vld [vmem:[%s1 + $0x30] sm:$0xff]
    %v51 = vld [vmem:[%s1 + $0x38] sm:$0xff]
    %v52 = vld [vmem:[%s1 + $0x40] sm:$0xff]
    %v53 = vld [vmem:[%s1 + $0x48] sm:$0xff]
    %v54 = vld [vmem:[%s1 + $0x50] sm:$0xff]
    %v55 = vld [vmem:[%s1 + $0x58] sm:$0xff]
    %v56 = vld [vmem:[%s1 + $0x60] sm:$0xff]
    %v57 = vld [vmem:[%s1 + $0x68] sm:$0xff]
    %v58 = vld [vmem:[%s1 + $0x70] sm:$0xff]
    %v59 = vld [vmem:[%s1 + $0x78] sm:$0xff]
    %v60 = vld [vmem:[%s2] sm:$0xf]
    %v62 = vlaneseq
    %v63 = vshrl.u32 %v62, 7
    %v64 = vsub.s32 0, %v63
    %v65 = vrot.slane %v60, %v64
    %v66 = vlaneseq
    %v67 = vshrl.u32 %v66, 7
    %v68 = vsub.s32 1, %v67
    %v69 = vrot.slane %v60, %v68
    %v70 = vlaneseq
    %v71 = vshrl.u32 %v70, 7
    %v72 = vsub.s32 2, %v71
    %v73 = vrot.slane %v60, %v72
    %v74 = vlaneseq
    %v75 = vshrl.u32 %v74, 7
    %v76 = vsub.s32 3, %v75
    %v77 = vrot.slane %v60, %v76
    %v98 = vunpack.c.l.b16 %v44
    %v99 = vunpack.c.h.b16 %v44
    %v100 = vunpack.c.l.b16 %v45
    %v101 = vunpack.c.h.b16 %v45
    %v102 = vunpack.c.l.b16 %v46
    %v103 = vunpack.c.h.b16 %v46
    %v104 = vunpack.c.l.b16 %v47
    %v105 = vunpack.c.h.b16 %v47
    %v106 = vunpack.c.l.b16 %v48
    %v107 = vunpack.c.h.b16 %v48
    %v108 = vunpack.c.l.b16 %v49
    %v109 = vunpack.c.h.b16 %v49
    %v110 = vunpack.c.l.b16 %v50
    %v111 = vunpack.c.h.b16 %v50
    %v112 = vunpack.c.l.b16 %v51
    %v113 = vunpack.c.h.b16 %v51
    %v114 = vunpack.c.l.b16 %v52
    %v115 = vunpack.c.h.b16 %v52
    %v116 = vunpack.c.l.b16 %v53
    %v117 = vunpack.c.h.b16 %v53
    %v118 = vunpack.c.l.b16 %v54
    %v119 = vunpack.c.h.b16 %v54
    %v120 = vunpack.c.l.b16 %v55
    %v121 = vunpack.c.h.b16 %v55
    %v122 = vunpack.c.l.b16 %v56
    %v123 = vunpack.c.h.b16 %v56
    %v124 = vunpack.c.l.b16 %v57
    %v125 = vunpack.c.h.b16 %v57
    %v126 = vunpack.c.l.b16 %v58
    %v127 = vunpack.c.h.b16 %v58
    %v128 = vunpack.c.l.b16 %v59
    %v129 = vunpack.c.h.b16 %v59
    %v130 = vpack.c.b16 %v102, %v98
    %v131 = vpack.c.b16 %v103, %v99
    %v132 = vpack.c.b16 %v104, %v100
    %v133 = vpack.c.b16 %v105, %v101
    %v134 = vpack.c.b16 %v110, %v106
    %v135 = vpack.c.b16 %v111, %v107
    %v136 = vpack.c.b16 %v112, %v108
    %v137 = vpack.c.b16 %v113, %v109
    %v138 = vpack.c.b16 %v118, %v114
    %v139 = vpack.c.b16 %v119, %v115
    %v140 = vpack.c.b16 %v120, %v116
    %v141 = vpack.c.b16 %v121, %v117
    %v142 = vpack.c.b16 %v126, %v122
    %v143 = vpack.c.b16 %v127, %v123
    %v144 = vpack.c.b16 %v128, %v124
    %v145 = vpack.c.b16 %v129, %v125
    %vm162 = vcmask 523264
    %v164 = vsel %vm162, %v43, 0
    %166 = vmatprep.subr.bf16.mxu0 0
    %167 = vmatpush1.bf16.msra.mxu0 0
    %168 = vmatprep.subr.bf16.mxu0 0
    %169 = vmatpush1.bf16.msra.mxu0 0
    %170 = vmatprep.subr.bf16.mxu0 0
    %171 = vmatpush1.bf16.msra.mxu0 0
    %172 = vmatprep.subr.bf16.mxu0 0
    %173 = vmatpush1.bf16.msra.mxu0 0
    %174 = vmatprep.subr.bf16.mxu0 %v143
    %175 = vmatpush1.bf16.msra.mxu0 %v142
    %176 = vmatprep.subr.bf16.mxu0 %v139
    %177 = vmatpush1.bf16.msra.mxu0 %v138
    %178 = vmatprep.subr.bf16.mxu0 %v135
    %179 = vmatpush1.bf16.msra.mxu0 %v134
    %180 = vmatprep.subr.bf16.mxu0 %v131
    %181 = vmatpush1.bf16.msra.mxu0 %v130
    %182 = vmatprep.subr.bf16.mxu0 0
    %183 = vmatpush2.bf16.msra.mxu0 0
    %184 = vmatprep.subr.bf16.mxu0 0
    %185 = vmatpush2.bf16.msra.mxu0 0
    %186 = vmatprep.subr.bf16.mxu0 0
    %187 = vmatpush2.bf16.msra.mxu0 0
    %188 = vmatprep.subr.bf16.mxu0 0
    %189 = vmatpush2.bf16.msra.mxu0 0
    %190 = vmatprep.subr.bf16.mxu0 0
    %191 = vmatpush2.bf16.msra.mxu0 0
    %192 = vmatprep.subr.bf16.mxu0 0
    %193 = vmatpush2.bf16.msra.mxu0 0
    %194 = vmatprep.subr.bf16.mxu0 0
    %195 = vmatpush2.bf16.msra.mxu0 0
    %196 = vmatprep.subr.bf16.mxu0 0
    %197 = vmatpush2.bf16.msra.mxu0 0
    %198 = vmatprep.mubr.bf16.mxu0 0
    %199 = vmatmul.mubr.bf16.gmra.mxu0 %v164
    %v200 = vpop.f32.mrf.mxu0
    %v201 = vadd.f32 %v65, %v200
    %v202 = vpop.f32.mrf.mxu0
    %v203 = vadd.f32 %v69, %v202
    %v204 = vpop.f32.mrf.mxu0
    %v205 = vadd.f32 %v65, %v204
    %v206 = vpop.f32.mrf.mxu0
    %v207 = vadd.f32 %v69, %v206
    %208 = vdwg.mxu0
    %209 = vmatprep.subr.bf16.mxu0 0
    %210 = vmatpush1.bf16.msra.mxu0 0
    %211 = vmatprep.subr.bf16.mxu0 0
    %212 = vmatpush1.bf16.msra.mxu0 0
    %213 = vmatprep.subr.bf16.mxu0 0
    %214 = vmatpush1.bf16.msra.mxu0 0
    %215 = vmatprep.subr.bf16.mxu0 0
    %216 = vmatpush1.bf16.msra.mxu0 0
    %217 = vmatprep.subr.bf16.mxu0 %v145
    %218 = vmatpush1.bf16.msra.mxu0 %v144
    %219 = vmatprep.subr.bf16.mxu0 %v141
    %220 = vmatpush1.bf16.msra.mxu0 %v140
    %221 = vmatprep.subr.bf16.mxu0 %v137
    %222 = vmatpush1.bf16.msra.mxu0 %v136
    %223 = vmatprep.subr.bf16.mxu0 %v133
    %224 = vmatpush1.bf16.msra.mxu0 %v132
    %225 = vmatprep.subr.bf16.mxu0 0
    %226 = vmatpush2.bf16.msra.mxu0 0
    %227 = vmatprep.subr.bf16.mxu0 0
    %228 = vmatpush2.bf16.msra.mxu0 0
    %229 = vmatprep.subr.bf16.mxu0 0
    %230 = vmatpush2.bf16.msra.mxu0 0
    %231 = vmatprep.subr.bf16.mxu0 0
    %232 = vmatpush2.bf16.msra.mxu0 0
    %233 = vmatprep.subr.bf16.mxu0 0
    %234 = vmatpush2.bf16.msra.mxu0 0
    %235 = vmatprep.subr.bf16.mxu0 0
    %236 = vmatpush2.bf16.msra.mxu0 0
    %237 = vmatprep.subr.bf16.mxu0 0
    %238 = vmatpush2.bf16.msra.mxu0 0
    %239 = vmatprep.subr.bf16.mxu0 0
    %240 = vmatpush2.bf16.msra.mxu0 0
    %241 = vmatprep.mubr.bf16.mxu0 0
    %242 = vmatmul.mubr.bf16.gmra.mxu0 %v164
    %v243 = vpop.f32.mrf.mxu0
    %v244 = vadd.f32 %v73, %v243
    %v245 = vpop.f32.mrf.mxu0
    %v246 = vadd.f32 %v77, %v245
    %v247 = vpop.f32.mrf.mxu0
    %v248 = vadd.f32 %v73, %v247
    %v249 = vpop.f32.mrf.mxu0
    %v250 = vadd.f32 %v77, %v249
    %251 = vdwg.mxu0
    %v252 = vmax.f32 %v201, 0.0
    %v253 = vmax.f32 %v203, 0.0
    %v254 = vmax.f32 %v244, 0.0
    %v255 = vmax.f32 %v246, 0.0
    %v256 = vmax.f32 %v205, 0.0
    %v257 = vmax.f32 %v207, 0.0
    %v258 = vmax.f32 %v248, 0.0
    %v259 = vmax.f32 %v250, 0.0
    %v260 = vpack.c.bf16 %v256, %v252
    %v261 = vpack.c.bf16 %v257, %v253
    %v262 = vpack.c.bf16 %v258, %v254
    %v263 = vpack.c.bf16 %v259, %v255
    %v268 = vunpack.c.l.b16 %v260
    %v269 = vunpack.c.l.b16 %v261
    %v270 = vunpack.c.l.b16 %v262
    %v271 = vunpack.c.l.b16 %v263
    %v272 = vunpack.c.h.b16 %v260
    %v273 = vunpack.c.h.b16 %v261
    %v274 = vunpack.c.h.b16 %v262
    %v275 = vunpack.c.h.b16 %v263
    %v276 = vpack.c.b16 %v269, %v268
    %v277 = vpack.c.b16 %v271, %v270
    %v278 = vpack.c.b16 %v273, %v272
    %v279 = vpack.c.b16 %v275, %v274
    %284 = vst [vmem:[#allocation2] sm:$0xff] %v276
    %285 = vst [vmem:[#allocation2 + $0x8] sm:$0xff] %v277
    %286 = vst [vmem:[#allocation2 + $0x10] sm:$0xff] %v278
    %287 = vst [vmem:[#allocation2 + $0x18] sm:$0xff] %v279
    %v288 = vld [vmem:[#allocation2] sm:$0xff]
    %v289 = vld [vmem:[#allocation2 + $0x8] sm:$0xff]
    %v290 = vld [vmem:[#allocation2 + $0x10] sm:$0xff]
    %v291 = vld [vmem:[#allocation2 + $0x18] sm:$0xff]
    %v292 = vld [vmem:[#allocation4] sm:$0xff]
    %v293 = vld [vmem:[#allocation4 + $0x8] sm:$0xff]
    %v294 = vld [vmem:[#allocation4 + $0x10] sm:$0xff]
    %v295 = vld [vmem:[#allocation4 + $0x18] sm:$0xff]
    %v296 = vld [vmem:[#allocation4 + $0x20] sm:$0xff]
    %v297 = vld [vmem:[#allocation4 + $0x28] sm:$0xff]
    %v298 = vld [vmem:[#allocation4 + $0x30] sm:$0xff]
    %v299 = vld [vmem:[#allocation4 + $0x38] sm:$0xff]
    %v300 = vld [vmem:[#allocation4 + $0x40] sm:$0xff]
    %v301 = vld [vmem:[#allocation4 + $0x48] sm:$0xff]
    %v302 = vld [vmem:[#allocation4 + $0x50] sm:$0xff]
    %v303 = vld [vmem:[#allocation4 + $0x58] sm:$0xff]
    %v304 = vld [vmem:[#allocation4 + $0x60] sm:$0xff]
    %v305 = vld [vmem:[#allocation4 + $0x68] sm:$0xff]
    %v306 = vld [vmem:[#allocation4 + $0x70] sm:$0xff]
    %v307 = vld [vmem:[#allocation4 + $0x78] sm:$0xff]
    %v308 = vld [vmem:[#allocation4 + $0x80] sm:$0xff]
    %v309 = vld [vmem:[#allocation4 + $0x88] sm:$0xff]
    %v310 = vld [vmem:[#allocation4 + $0x90] sm:$0xff]
    %v311 = vld [vmem:[#allocation4 + $0x98] sm:$0xff]
    %v312 = vld [vmem:[#allocation4 + $0xa0] sm:$0xff]
    %v313 = vld [vmem:[#allocation4 + $0xa8] sm:$0xff]
    %v314 = vld [vmem:[#allocation4 + $0xb0] sm:$0xff]
    %v315 = vld [vmem:[#allocation4 + $0xb8] sm:$0xff]
    %v316 = vld [vmem:[#allocation4 + $0xc0] sm:$0xff]
    %v317 = vld [vmem:[#allocation4 + $0xc8] sm:$0xff]
    %v318 = vld [vmem:[#allocation4 + $0xd0] sm:$0xff]
    %v319 = vld [vmem:[#allocation4 + $0xd8] sm:$0xff]
    %v320 = vld [vmem:[#allocation4 + $0xe0] sm:$0xff]
    %v321 = vld [vmem:[#allocation4 + $0xe8] sm:$0xff]
    %v322 = vld [vmem:[#allocation4 + $0xf0] sm:$0xff]
    %v323 = vld [vmem:[#allocation4 + $0xf8] sm:$0xff]
    %v324 = vld [vmem:[#allocation4 + $0x100] sm:$0xff]
    %v325 = vld [vmem:[#allocation4 + $0x108] sm:$0xff]
    %v326 = vld [vmem:[#allocation4 + $0x110] sm:$0xff]
    %v327 = vld [vmem:[#allocation4 + $0x118] sm:$0xff]
    %v328 = vld [vmem:[#allocation4 + $0x120] sm:$0xff]
    %v329 = vld [vmem:[#allocation4 + $0x128] sm:$0xff]
    %v330 = vld [vmem:[#allocation4 + $0x130] sm:$0xff]
    %v331 = vld [vmem:[#allocation4 + $0x138] sm:$0xff]
    %v332 = vld [vmem:[#allocation4 + $0x140] sm:$0xff]
    %v333 = vld [vmem:[#allocation4 + $0x148] sm:$0xff]
    %v334 = vld [vmem:[#allocation4 + $0x150] sm:$0xff]
    %v335 = vld [vmem:[#allocation4 + $0x158] sm:$0xff]
    %v336 = vld [vmem:[#allocation4 + $0x160] sm:$0xff]
    %v337 = vld [vmem:[#allocation4 + $0x168] sm:$0xff]
    %v338 = vld [vmem:[#allocation4 + $0x170] sm:$0xff]
    %v339 = vld [vmem:[#allocation4 + $0x178] sm:$0xff]
    %v340 = vld [vmem:[#allocation4 + $0x180] sm:$0xff]
    %v341 = vld [vmem:[#allocation4 + $0x188] sm:$0xff]
    %v342 = vld [vmem:[#allocation4 + $0x190] sm:$0xff]
    %v343 = vld [vmem:[#allocation4 + $0x198] sm:$0xff]
    %v344 = vld [vmem:[#allocation4 + $0x1a0] sm:$0xff]
    %v345 = vld [vmem:[#allocation4 + $0x1a8] sm:$0xff]
    %v346 = vld [vmem:[#allocation4 + $0x1b0] sm:$0xff]
    %v347 = vld [vmem:[#allocation4 + $0x1b8] sm:$0xff]
    %v348 = vld [vmem:[#allocation4 + $0x1c0] sm:$0xff]
    %v349 = vld [vmem:[#allocation4 + $0x1c8] sm:$0xff]
    %v350 = vld [vmem:[#allocation4 + $0x1d0] sm:$0xff]
    %v351 = vld [vmem:[#allocation4 + $0x1d8] sm:$0xff]
    %v352 = vld [vmem:[#allocation4 + $0x1e0] sm:$0xff]
    %v353 = vld [vmem:[#allocation4 + $0x1e8] sm:$0xff]
    %v354 = vld [vmem:[#allocation4 + $0x1f0] sm:$0xff]
    %v355 = vld [vmem:[#allocation4 + $0x1f8] sm:$0xff]
    %v356 = vld [vmem:[%s4] sm:$0x3]
    %v358 = vlaneseq
    %v359 = vshrl.u32 %v358, 7
    %v360 = vsub.s32 0, %v359
    %v361 = vrot.slane %v356, %v360
    %v362 = vlaneseq
    %v363 = vshrl.u32 %v362, 7
    %v364 = vsub.s32 1, %v363
    %v365 = vrot.slane %v356, %v364
    %v372 = vunpack.c.l.b16 %v288
    %v373 = vunpack.c.h.b16 %v288
    %v374 = vunpack.c.l.b16 %v289
    %v375 = vunpack.c.h.b16 %v289
    %v376 = vunpack.c.l.b16 %v290
    %v377 = vunpack.c.h.b16 %v290
    %v378 = vunpack.c.l.b16 %v291
    %v379 = vunpack.c.h.b16 %v291
    %v380 = vpack.c.b16 %v376, %v372
    %v381 = vpack.c.b16 %v377, %v373
    %v382 = vpack.c.b16 %v378, %v374
    %v383 = vpack.c.b16 %v379, %v375
    %v452 = vunpack.c.l.b16 %v292
    %v453 = vunpack.c.h.b16 %v292
    %v454 = vunpack.c.l.b16 %v293
    %v455 = vunpack.c.h.b16 %v293
    %v456 = vunpack.c.l.b16 %v294
    %v457 = vunpack.c.h.b16 %v294
    %v458 = vunpack.c.l.b16 %v295
    %v459 = vunpack.c.h.b16 %v295
    %v460 = vunpack.c.l.b16 %v296
    %v461 = vunpack.c.h.b16 %v296
    %v462 = vunpack.c.l.b16 %v297
    %v463 = vunpack.c.h.b16 %v297
    %v464 = vunpack.c.l.b16 %v298
    %v465 = vunpack.c.h.b16 %v298
    %v466 = vunpack.c.l.b16 %v299
    %v467 = vunpack.c.h.b16 %v299
    %v468 = vunpack.c.l.b16 %v300
    %v469 = vunpack.c.h.b16 %v300
    %v470 = vunpack.c.l.b16 %v301
    %v471 = vunpack.c.h.b16 %v301
    %v472 = vunpack.c.l.b16 %v302
    %v473 = vunpack.c.h.b16 %v302
    %v474 = vunpack.c.l.b16 %v303
    %v475 = vunpack.c.h.b16 %v303
    %v476 = vunpack.c.l.b16 %v304
    %v477 = vunpack.c.h.b16 %v304
    %v478 = vunpack.c.l.b16 %v305
    %v479 = vunpack.c.h.b16 %v305
    %v480 = vunpack.c.l.b16 %v306
    %v481 = vunpack.c.h.b16 %v306
    %v482 = vunpack.c.l.b16 %v307
    %v483 = vunpack.c.h.b16 %v307
    %v484 = vunpack.c.l.b16 %v308
    %v485 = vunpack.c.h.b16 %v308
    %v486 = vunpack.c.l.b16 %v309
    %v487 = vunpack.c.h.b16 %v309
    %v488 = vunpack.c.l.b16 %v310
    %v489 = vunpack.c.h.b16 %v310
    %v490 = vunpack.c.l.b16 %v311
    %v491 = vunpack.c.h.b16 %v311
    %v492 = vunpack.c.l.b16 %v312
    %v493 = vunpack.c.h.b16 %v312
    %v494 = vunpack.c.l.b16 %v313
    %v495 = vunpack.c.h.b16 %v313
    %v496 = vunpack.c.l.b16 %v314
    %v497 = vunpack.c.h.b16 %v314
    %v498 = vunpack.c.l.b16 %v315
    %v499 = vunpack.c.h.b16 %v315
    %v500 = vunpack.c.l.b16 %v316
    %v501 = vunpack.c.h.b16 %v316
    %v502 = vunpack.c.l.b16 %v317
    %v503 = vunpack.c.h.b16 %v317
    %v504 = vunpack.c.l.b16 %v318
    %v505 = vunpack.c.h.b16 %v318
    %v506 = vunpack.c.l.b16 %v319
    %v507 = vunpack.c.h.b16 %v319
    %v508 = vunpack.c.l.b16 %v320
    %v509 = vunpack.c.h.b16 %v320
    %v510 = vunpack.c.l.b16 %v321
    %v511 = vunpack.c.h.b16 %v321
    %v512 = vunpack.c.l.b16 %v322
    %v513 = vunpack.c.h.b16 %v322
    %v514 = vunpack.c.l.b16 %v323
    %v515 = vunpack.c.h.b16 %v323
    %v516 = vunpack.c.l.b16 %v324
    %v517 = vunpack.c.h.b16 %v324
    %v518 = vunpack.c.l.b16 %v325
    %v519 = vunpack.c.h.b16 %v325
    %v520 = vunpack.c.l.b16 %v326
    %v521 = vunpack.c.h.b16 %v326
    %v522 = vunpack.c.l.b16 %v327
    %v523 = vunpack.c.h.b16 %v327
    %v524 = vunpack.c.l.b16 %v328
    %v525 = vunpack.c.h.b16 %v328
    %v526 = vunpack.c.l.b16 %v329
    %v527 = vunpack.c.h.b16 %v329
    %v528 = vunpack.c.l.b16 %v330
    %v529 = vunpack.c.h.b16 %v330
    %v530 = vunpack.c.l.b16 %v331
    %v531 = vunpack.c.h.b16 %v331
    %v532 = vunpack.c.l.b16 %v332
    %v533 = vunpack.c.h.b16 %v332
    %v534 = vunpack.c.l.b16 %v333
    %v535 = vunpack.c.h.b16 %v333
    %v536 = vunpack.c.l.b16 %v334
    %v537 = vunpack.c.h.b16 %v334
    %v538 = vunpack.c.l.b16 %v335
    %v539 = vunpack.c.h.b16 %v335
    %v540 = vunpack.c.l.b16 %v336
    %v541 = vunpack.c.h.b16 %v336
    %v542 = vunpack.c.l.b16 %v337
    %v543 = vunpack.c.h.b16 %v337
    %v544 = vunpack.c.l.b16 %v338
    %v545 = vunpack.c.h.b16 %v338
    %v546 = vunpack.c.l.b16 %v339
    %v547 = vunpack.c.h.b16 %v339
    %v548 = vunpack.c.l.b16 %v340
    %v549 = vunpack.c.h.b16 %v340
    %v550 = vunpack.c.l.b16 %v341
    %v551 = vunpack.c.h.b16 %v341
    %v552 = vunpack.c.l.b16 %v342
    %v553 = vunpack.c.h.b16 %v342
    %v554 = vunpack.c.l.b16 %v343
    %v555 = vunpack.c.h.b16 %v343
    %v556 = vunpack.c.l.b16 %v344
    %v557 = vunpack.c.h.b16 %v344
    %v558 = vunpack.c.l.b16 %v345
    %v559 = vunpack.c.h.b16 %v345
    %v560 = vunpack.c.l.b16 %v346
    %v561 = vunpack.c.h.b16 %v346
    %v562 = vunpack.c.l.b16 %v347
    %v563 = vunpack.c.h.b16 %v347
    %v564 = vunpack.c.l.b16 %v348
    %v565 = vunpack.c.h.b16 %v348
    %v566 = vunpack.c.l.b16 %v349
    %v567 = vunpack.c.h.b16 %v349
    %v568 = vunpack.c.l.b16 %v350
    %v569 = vunpack.c.h.b16 %v350
    %v570 = vunpack.c.l.b16 %v351
    %v571 = vunpack.c.h.b16 %v351
    %v572 = vunpack.c.l.b16 %v352
    %v573 = vunpack.c.h.b16 %v352
    %v574 = vunpack.c.l.b16 %v353
    %v575 = vunpack.c.h.b16 %v353
    %v576 = vunpack.c.l.b16 %v354
    %v577 = vunpack.c.h.b16 %v354
    %v578 = vunpack.c.l.b16 %v355
    %v579 = vunpack.c.h.b16 %v355
    %v580 = vpack.c.b16 %v454, %v452
    %v581 = vpack.c.b16 %v455, %v453
    %v582 = vpack.c.b16 %v458, %v456
    %v583 = vpack.c.b16 %v459, %v457
    %v584 = vpack.c.b16 %v462, %v460
    %v585 = vpack.c.b16 %v463, %v461
    %v586 = vpack.c.b16 %v466, %v464
    %v587 = vpack.c.b16 %v467, %v465
    %v588 = vpack.c.b16 %v470, %v468
    %v589 = vpack.c.b16 %v471, %v469
    %v590 = vpack.c.b16 %v474, %v472
    %v591 = vpack.c.b16 %v475, %v473
    %v592 = vpack.c.b16 %v478, %v476
    %v593 = vpack.c.b16 %v479, %v477
    %v594 = vpack.c.b16 %v482, %v480
    %v595 = vpack.c.b16 %v483, %v481
    %v596 = vpack.c.b16 %v486, %v484
    %v597 = vpack.c.b16 %v487, %v485
    %v598 = vpack.c.b16 %v490, %v488
    %v599 = vpack.c.b16 %v491, %v489
    %v600 = vpack.c.b16 %v494, %v492
    %v601 = vpack.c.b16 %v495, %v493
    %v602 = vpack.c.b16 %v498, %v496
    %v603 = vpack.c.b16 %v499, %v497
    %v604 = vpack.c.b16 %v502, %v500
    %v605 = vpack.c.b16 %v503, %v501
    %v606 = vpack.c.b16 %v506, %v504
    %v607 = vpack.c.b16 %v507, %v505
    %v608 = vpack.c.b16 %v510, %v508
    %v609 = vpack.c.b16 %v511, %v509
    %v610 = vpack.c.b16 %v514, %v512
    %v611 = vpack.c.b16 %v515, %v513
    %v612 = vpack.c.b16 %v518, %v516
    %v613 = vpack.c.b16 %v519, %v517
    %v614 = vpack.c.b16 %v522, %v520
    %v615 = vpack.c.b16 %v523, %v521
    %v616 = vpack.c.b16 %v526, %v524
    %v617 = vpack.c.b16 %v527, %v525
    %v618 = vpack.c.b16 %v530, %v528
    %v619 = vpack.c.b16 %v531, %v529
    %v620 = vpack.c.b16 %v534, %v532
    %v621 = vpack.c.b16 %v535, %v533
    %v622 = vpack.c.b16 %v538, %v536
    %v623 = vpack.c.b16 %v539, %v537
    %v624 = vpack.c.b16 %v542, %v540
    %v625 = vpack.c.b16 %v543, %v541
    %v626 = vpack.c.b16 %v546, %v544
    %v627 = vpack.c.b16 %v547, %v545
    %v628 = vpack.c.b16 %v550, %v548
    %v629 = vpack.c.b16 %v551, %v549
    %v630 = vpack.c.b16 %v554, %v552
    %v631 = vpack.c.b16 %v555, %v553
    %v632 = vpack.c.b16 %v558, %v556
    %v633 = vpack.c.b16 %v559, %v557
    %v634 = vpack.c.b16 %v562, %v560
    %v635 = vpack.c.b16 %v563, %v561
    %v636 = vpack.c.b16 %v566, %v564
    %v637 = vpack.c.b16 %v567, %v565
    %v638 = vpack.c.b16 %v570, %v568
    %v639 = vpack.c.b16 %v571, %v569
    %v640 = vpack.c.b16 %v574, %v572
    %v641 = vpack.c.b16 %v575, %v573
    %v642 = vpack.c.b16 %v578, %v576
    %v643 = vpack.c.b16 %v579, %v577
    %708 = vmatprep.subr.bf16.mxu0 %v595
    %709 = vmatpush1.bf16.msra.mxu0 %v594
    %710 = vmatprep.subr.bf16.mxu0 %v593
    %711 = vmatpush1.bf16.msra.mxu0 %v592
    %712 = vmatprep.subr.bf16.mxu0 %v591
    %713 = vmatpush1.bf16.msra.mxu0 %v590
    %714 = vmatprep.subr.bf16.mxu0 %v589
    %715 = vmatpush1.bf16.msra.mxu0 %v588
    %716 = vmatprep.subr.bf16.mxu0 %v587
    %717 = vmatpush1.bf16.msra.mxu0 %v586
    %718 = vmatprep.subr.bf16.mxu0 %v585
    %719 = vmatpush1.bf16.msra.mxu0 %v584
    %720 = vmatprep.subr.bf16.mxu0 %v583
    %721 = vmatpush1.bf16.msra.mxu0 %v582
    %722 = vmatprep.subr.bf16.mxu0 %v581
    %723 = vmatpush1.bf16.msra.mxu0 %v580
    %724 = vmatprep.subr.bf16.mxu0 %v611
    %725 = vmatpush2.bf16.msra.mxu0 %v610
    %726 = vmatprep.subr.bf16.mxu0 %v609
    %727 = vmatpush2.bf16.msra.mxu0 %v608
    %728 = vmatprep.subr.bf16.mxu0 %v607
    %729 = vmatpush2.bf16.msra.mxu0 %v606
    %730 = vmatprep.subr.bf16.mxu0 %v605
    %731 = vmatpush2.bf16.msra.mxu0 %v604
    %732 = vmatprep.subr.bf16.mxu0 %v603
    %733 = vmatpush2.bf16.msra.mxu0 %v602
    %734 = vmatprep.subr.bf16.mxu0 %v601
    %735 = vmatpush2.bf16.msra.mxu0 %v600
    %736 = vmatprep.subr.bf16.mxu0 %v599
    %737 = vmatpush2.bf16.msra.mxu0 %v598
    %738 = vmatprep.subr.bf16.mxu0 %v597
    %739 = vmatpush2.bf16.msra.mxu0 %v596
    %740 = vmatprep.mubr.bf16.mxu0 %v381
    %741 = vmatmul.mubr.bf16.gmra.mxu0 %v380
    %v742 = vpop.f32.mrf.mxu0
    %v743 = vadd.f32 %v361, %v742
    %v744 = vpop.f32.mrf.mxu0
    %v745 = vadd.f32 %v365, %v744
    %v746 = vpop.f32.mrf.mxu0
    %v747 = vadd.f32 %v361, %v746
    %v748 = vpop.f32.mrf.mxu0
    %v749 = vadd.f32 %v365, %v748
    %750 = vdwg.mxu0
    %751 = vmatprep.subr.bf16.mxu0 %v627
    %752 = vmatpush1.bf16.msra.mxu0 %v626
    %753 = vmatprep.subr.bf16.mxu0 %v625
    %754 = vmatpush1.bf16.msra.mxu0 %v624
    %755 = vmatprep.subr.bf16.mxu0 %v623
    %756 = vmatpush1.bf16.msra.mxu0 %v622
    %757 = vmatprep.subr.bf16.mxu0 %v621
    %758 = vmatpush1.bf16.msra.mxu0 %v620
    %759 = vmatprep.subr.bf16.mxu0 %v619
    %760 = vmatpush1.bf16.msra.mxu0 %v618
    %761 = vmatprep.subr.bf16.mxu0 %v617
    %762 = vmatpush1.bf16.msra.mxu0 %v616
    %763 = vmatprep.subr.bf16.mxu0 %v615
    %764 = vmatpush1.bf16.msra.mxu0 %v614
    %765 = vmatprep.subr.bf16.mxu0 %v613
    %766 = vmatpush1.bf16.msra.mxu0 %v612
    %767 = vmatprep.subr.bf16.mxu0 %v643
    %768 = vmatpush2.bf16.msra.mxu0 %v642
    %769 = vmatprep.subr.bf16.mxu0 %v641
    %770 = vmatpush2.bf16.msra.mxu0 %v640
    %771 = vmatprep.subr.bf16.mxu0 %v639
    %772 = vmatpush2.bf16.msra.mxu0 %v638
    %773 = vmatprep.subr.bf16.mxu0 %v637
    %774 = vmatpush2.bf16.msra.mxu0 %v636
    %775 = vmatprep.subr.bf16.mxu0 %v635
    %776 = vmatpush2.bf16.msra.mxu0 %v634
    %777 = vmatprep.subr.bf16.mxu0 %v633
    %778 = vmatpush2.bf16.msra.mxu0 %v632
    %779 = vmatprep.subr.bf16.mxu0 %v631
    %780 = vmatpush2.bf16.msra.mxu0 %v630
    %781 = vmatprep.subr.bf16.mxu0 %v629
    %782 = vmatpush2.bf16.msra.mxu0 %v628
    %783 = vmatprep.mubr.bf16.mxu0 %v383
    %784 = vmatmul.mubr.bf16.gmra.mxu0 %v382
    %v785 = vpop.f32.mrf.mxu0
    %v786 = vadd.f32 %v743, %v785
    %v787 = vpop.f32.mrf.mxu0
    %v788 = vadd.f32 %v745, %v787
    %v789 = vpop.f32.mrf.mxu0
    %v790 = vadd.f32 %v747, %v789
    %v791 = vpop.f32.mrf.mxu0
    %v792 = vadd.f32 %v749, %v791
    %793 = vdwg.mxu0
    %v794 = vmax.f32 %v786, 0.0
    %v795 = vmax.f32 %v788, 0.0
    %v796 = vmax.f32 %v790, 0.0
    %v797 = vmax.f32 %v792, 0.0
    %v798 = vpack.c.bf16 %v796, %v794
    %v799 = vpack.c.bf16 %v797, %v795
    %v802 = vunpack.c.l.b16 %v798
    %v803 = vunpack.c.l.b16 %v799
    %v804 = vunpack.c.h.b16 %v798
    %v805 = vunpack.c.h.b16 %v799
    %v806 = vpack.c.b16 %v803, %v802
    %v807 = vpack.c.b16 %v805, %v804
    %810 = vst [vmem:[#allocation3] sm:$0xff] %v806
    %811 = vst [vmem:[#allocation3 + $0x8] sm:$0xff] %v807
    %v812 = vld [vmem:[#allocation3] sm:$0xff]
    %v813 = vld [vmem:[#allocation3 + $0x8] sm:$0xff]
    %v814 = vld [vmem:[%s5] sm:$0xf]
    %v815 = vld [vmem:[%s5 + $0x4] sm:$0xf]
    %v816 = vld [vmem:[%s5 + $0x8] sm:$0xf]
    %v817 = vld [vmem:[%s5 + $0xc] sm:$0xf]
    %v818 = vld [vmem:[%s5 + $0x10] sm:$0xf]
    %v819 = vld [vmem:[%s5 + $0x14] sm:$0xf]
    %v820 = vld [vmem:[%s5 + $0x18] sm:$0xf]
    %v821 = vld [vmem:[%s5 + $0x1c] sm:$0xf]
    %v822 = vld [vmem:[%s5 + $0x20] sm:$0xf]
    %v823 = vld [vmem:[%s5 + $0x24] sm:$0xf]
    %v824 = vld [vmem:[%s5 + $0x28] sm:$0xf]
    %v825 = vld [vmem:[%s5 + $0x2c] sm:$0xf]
    %v826 = vld [vmem:[%s5 + $0x30] sm:$0xf]
    %v827 = vld [vmem:[%s5 + $0x34] sm:$0xf]
    %v828 = vld [vmem:[%s5 + $0x38] sm:$0xf]
    %v829 = vld [vmem:[%s5 + $0x3c] sm:$0xf]
    %v830 = vld [vmem:[%s5 + $0x40] sm:$0xf]
    %v831 = vld [vmem:[%s5 + $0x44] sm:$0xf]
    %v832 = vld [vmem:[%s5 + $0x48] sm:$0xf]
    %v833 = vld [vmem:[%s5 + $0x4c] sm:$0xf]
    %v834 = vld [vmem:[%s5 + $0x50] sm:$0xf]
    %v835 = vld [vmem:[%s5 + $0x54] sm:$0xf]
    %v836 = vld [vmem:[%s5 + $0x58] sm:$0xf]
    %v837 = vld [vmem:[%s5 + $0x5c] sm:$0xf]
    %v838 = vld [vmem:[%s5 + $0x60] sm:$0xf]
    %v839 = vld [vmem:[%s5 + $0x64] sm:$0xf]
    %v840 = vld [vmem:[%s5 + $0x68] sm:$0xf]
    %v841 = vld [vmem:[%s5 + $0x6c] sm:$0xf]
    %v842 = vld [vmem:[%s5 + $0x70] sm:$0xf]
    %v843 = vld [vmem:[%s5 + $0x74] sm:$0xf]
    %v844 = vld [vmem:[%s5 + $0x78] sm:$0xf]
    %v845 = vld [vmem:[%s5 + $0x7c] sm:$0xf]
    %v846 = vld [vmem:[%s6] sm:$0x1]
    %v848 = vlaneseq
    %v849 = vshrl.u32 %v848, 7
    %v850 = vsub.s32 0, %v849
    %v851 = vrot.slane %v846, %v850
    %v855 = vunpack.c.l.b16 %v812
    %v856 = vunpack.c.h.b16 %v812
    %v857 = vunpack.c.l.b16 %v813
    %v858 = vunpack.c.h.b16 %v813
    %v859 = vpack.c.b16 %v857, %v855
    %v860 = vpack.c.b16 %v858, %v856
    %v895 = vunpack.c.l.b16 %v814
    %v896 = vunpack.c.l.b16 %v815
    %v897 = vunpack.c.l.b16 %v816
    %v898 = vunpack.c.l.b16 %v817
    %v899 = vunpack.c.l.b16 %v818
    %v900 = vunpack.c.l.b16 %v819
    %v901 = vunpack.c.l.b16 %v820
    %v902 = vunpack.c.l.b16 %v821
    %v903 = vunpack.c.l.b16 %v822
    %v904 = vunpack.c.l.b16 %v823
    %v905 = vunpack.c.l.b16 %v824
    %v906 = vunpack.c.l.b16 %v825
    %v907 = vunpack.c.l.b16 %v826
    %v908 = vunpack.c.l.b16 %v827
    %v909 = vunpack.c.l.b16 %v828
    %v910 = vunpack.c.l.b16 %v829
    %v911 = vunpack.c.l.b16 %v830
    %v912 = vunpack.c.l.b16 %v831
    %v913 = vunpack.c.l.b16 %v832
    %v914 = vunpack.c.l.b16 %v833
    %v915 = vunpack.c.l.b16 %v834
    %v916 = vunpack.c.l.b16 %v835
    %v917 = vunpack.c.l.b16 %v836
    %v918 = vunpack.c.l.b16 %v837
    %v919 = vunpack.c.l.b16 %v838
    %v920 = vunpack.c.l.b16 %v839
    %v921 = vunpack.c.l.b16 %v840
    %v922 = vunpack.c.l.b16 %v841
    %v923 = vunpack.c.l.b16 %v842
    %v924 = vunpack.c.l.b16 %v843
    %v925 = vunpack.c.l.b16 %v844
    %v926 = vunpack.c.l.b16 %v845
    %v927 = vpack.c.b16 %v896, %v895
    %v928 = vpack.c.b16 %v898, %v897
    %v929 = vpack.c.b16 %v900, %v899
    %v930 = vpack.c.b16 %v902, %v901
    %v931 = vpack.c.b16 %v904, %v903
    %v932 = vpack.c.b16 %v906, %v905
    %v933 = vpack.c.b16 %v908, %v907
    %v934 = vpack.c.b16 %v910, %v909
    %v935 = vpack.c.b16 %v912, %v911
    %v936 = vpack.c.b16 %v914, %v913
    %v937 = vpack.c.b16 %v916, %v915
    %v938 = vpack.c.b16 %v918, %v917
    %v939 = vpack.c.b16 %v920, %v919
    %v940 = vpack.c.b16 %v922, %v921
    %v941 = vpack.c.b16 %v924, %v923
    %v942 = vpack.c.b16 %v926, %v925
    %959 = vmatprep.subr.bf16.mxu0 0
    %960 = vmatpush1.bf16.msra.mxu0 %v934
    %961 = vmatprep.subr.bf16.mxu0 0
    %962 = vmatpush1.bf16.msra.mxu0 %v933
    %963 = vmatprep.subr.bf16.mxu0 0
    %964 = vmatpush1.bf16.msra.mxu0 %v932
    %965 = vmatprep.subr.bf16.mxu0 0
    %966 = vmatpush1.bf16.msra.mxu0 %v931
    %967 = vmatprep.subr.bf16.mxu0 0
    %968 = vmatpush1.bf16.msra.mxu0 %v930
    %969 = vmatprep.subr.bf16.mxu0 0
    %970 = vmatpush1.bf16.msra.mxu0 %v929
    %971 = vmatprep.subr.bf16.mxu0 0
    %972 = vmatpush1.bf16.msra.mxu0 %v928
    %973 = vmatprep.subr.bf16.mxu0 0
    %974 = vmatpush1.bf16.msra.mxu0 %v927
    %975 = vmatprep.subr.bf16.mxu0 0
    %976 = vmatpush2.bf16.msra.mxu0 %v942
    %977 = vmatprep.subr.bf16.mxu0 0
    %978 = vmatpush2.bf16.msra.mxu0 %v941
    %979 = vmatprep.subr.bf16.mxu0 0
    %980 = vmatpush2.bf16.msra.mxu0 %v940
    %981 = vmatprep.subr.bf16.mxu0 0
    %982 = vmatpush2.bf16.msra.mxu0 %v939
    %983 = vmatprep.subr.bf16.mxu0 0
    %984 = vmatpush2.bf16.msra.mxu0 %v938
    %985 = vmatprep.subr.bf16.mxu0 0
    %986 = vmatpush2.bf16.msra.mxu0 %v937
    %987 = vmatprep.subr.bf16.mxu0 0
    %988 = vmatpush2.bf16.msra.mxu0 %v936
    %989 = vmatprep.subr.bf16.mxu0 0
    %990 = vmatpush2.bf16.msra.mxu0 %v935
    %991 = vmatprep.mubr.bf16.mxu0 %v860
    %992 = vmatmul.mubr.bf16.gmra.mxu0 %v859
    %v993 = vpop.f32.mrf.mxu0
    %v994 = vadd.f32 %v851, %v993
    %v995 = vpop.f32.mrf.mxu0
    %v996 = vpop.f32.mrf.mxu0
    %v997 = vadd.f32 %v851, %v996
    %v998 = vpop.f32.mrf.mxu0
    %999 = vdwg.mxu0
    %v1000 = vmul.f32 %v994, 0.5
    %v1001 = vmul.f32 %v997, 0.5
    %v1002 = vtanh.pop %v1000
    %v1003 = vtanh.pop %v1001
    %v1004 = vadd.f32 %v1002, 1.0
    %v1005 = vadd.f32 %v1003, 1.0
    %v1006 = vmul.f32 %v1004, 0.5
    %v1007 = vmul.f32 %v1005, 0.5
    %vm1008 = vcmask 130048
    %1009 = vst.msk [vmem:[%s7] sm:$0xff] %vm1008, %v1006
    %1010 = vst.msk [vmem:[%s7 + $0x8] sm:$0xff] %vm1008, %v1007
    // Predicated region
    $region34: #{mlp_forward.1} parent=1 // pred_check
      _
    $region35: #{mlp_forward.1} parent=1 // pred_check_branch
      %1012 = sbr.rel (0) target = $region37
    $region36: #{mlp_forward.1} parent=1 // pred_region
      _
    $region37: #{mlp_forward.1} parent=1 // pred_fallthru
      _
    // Predicated region
    $region38: #{mlp_forward.1} parent=1 // pred_check
      _
    $region39: #{mlp_forward.1} parent=1 // pred_check_branch
      %1014 = sbr.rel (0) target = $region41
    $region40: #{mlp_forward.1} parent=1 // pred_region
      _
    $region41: #{mlp_forward.1} parent=1 // pred_fallthru
      _
    %1015 = vsyncpa [#allocation5], 1

</llo_original>
